<compile_context>
chip_gen: v7x
topology: tpu7x:2x2x1
jax: 0.10.0
libtpu: 0.0.40
codegen_flags: <defaults>
</compile_context>

<pallas_src>
import math

import jax
import jax.numpy as jnp
import numpy as np
from jax.experimental import pallas as pl
from jax.experimental.pallas import tpu as pltpu


# ----------------------------------------------------------------------------
# helpers
# ----------------------------------------------------------------------------
def _depth_interp_coeffs(d_in: int, d_out: int):
    """PyTorch trilinear (align_corners=False) coefficients along depth only.

    H/W sizes are unchanged by the interpolate call, so along those axes the
    half-pixel mapping is the identity; only the depth axis needs blending.
    """
    scale = d_in / d_out
    coeffs = []
    for zt in range(d_out):
        src = max((zt + 0.5) * scale - 0.5, 0.0)
        z0 = min(int(math.floor(src)), d_in - 1)
        z1 = z0 + 1 if z0 < d_in - 1 else z0
        lam = float(src - z0)
        coeffs.append((z0, z1, lam))
    return tuple(coeffs)


# ----------------------------------------------------------------------------
# Pallas kernels
# ----------------------------------------------------------------------------
def _grid_decoder_kernel(cols_ref, w_ref, b_ref, out_ref):
    # cols_ref: (1, D*K_pad, tile_hw)  bf16 im2col patches (lane = spatial)
    # w_ref:    (T_out*Cout, D*K_pad)  bf16 fused (depth-interp x conv) weight
    # b_ref:    (T_out*Cout, 1)        f32
    # out_ref:  (1, T_out*Cout, tile_hw) f32
    out_ref[0] = (
        jnp.dot(w_ref[...], cols_ref[0], preferred_element_type=jnp.float32)
        + b_ref[...]
    ).astype(out_ref.dtype)


def _mlp_kernel(xt_ref, w1t_ref, b1_ref, w2t_ref, b2_ref, out_ref):
    # xt_ref: (Din, TILE) rows-on-lanes; fc1 -> ReLU -> fc2, all lane-dense, pure f32.
    h = jnp.dot(w1t_ref[...], xt_ref[...], preferred_element_type=jnp.float32) + b1_ref[...]
    h = jnp.maximum(h, 0.0)
    out_ref[...] = (
        jnp.dot(w2t_ref[...], h, preferred_element_type=jnp.float32) + b2_ref[...]
    ).astype(out_ref.dtype)


# ----------------------------------------------------------------------------
# wrappers
# ----------------------------------------------------------------------------
def grid_decoder(grid_input, conv_w, conv_b, target_time, *, max_hw_tile=2048):
    """grid_input: (B, Cin, D, H, W) (PyTorch NCDHW);  conv_w: (3,3,3,Cin,Cout) DHWIO."""
    B, Cin, D, H, W = grid_input.shape
    Cout = conv_w.shape[-1]
    hw = H * W
    K = 27 * Cin
    K_pad = max(128, ((K + 127) // 128) * 128)   # pad contraction dim to full lanes
    DK = D * K_pad
    M = target_time * Cout

    # ---- im2col glue, channels-first, bf16-first to halve intermediate traffic.
    # TODO(synk): for very large grids, move the 27-tap gather in-kernel (DMA the
    # padded (Cin, D+2, H+2, W+2) block and build cols in VMEM via shifted slices)
    # to remove the im2col HBM read amplification entirely.
    x_pad = jnp.pad(grid_input.astype(jnp.bfloat16),
                    ((0, 0), (0, 0), (1, 1), (1, 1), (1, 1)))
    patches = []
    for kz in range(3):
        for ky in range(3):
            for kx in range(3):
                patches.append(x_pad[:, :, kz:kz + D, ky:ky + H, kx:kx + W])
    cols = jnp.concatenate(patches, axis=1)                       # (B, 27*Cin, D, H, W)
    cols = jnp.transpose(cols, (0, 2, 1, 3, 4)).reshape(B, D, K, hw)
    cols = jnp.pad(cols, ((0, 0), (0, 0), (0, K_pad - K), (0, 0)))
    cols = cols.reshape(B, DK, hw)                                # k-index = z*K_pad + k

    # ---- fused (depth-interp x conv) weight: one (M, DK) matmul per tile.
    interp = _depth_interp_coeffs(D, target_time)
    A = np.zeros((target_time, D), np.float32)                    # interp matrix (static)
    for zt, (z0, z1, lam) in enumerate(interp):
        A[zt, z0] += 1.0 - lam
        A[zt, z1] += lam
    w_ck = jnp.pad(conv_w.reshape(K, Cout).T, ((0, 0), (0, K_pad - K)))   # (Cout, K_pad)
    w_big = (jnp.asarray(A)[:, None, :, None] * w_ck[None, :, None, :]
             ).reshape(M, DK).astype(jnp.bfloat16)
    # rows of A sum to 1, so the bias passes through unchanged per (zt, c).
    b_big = jnp.broadcast_to(conv_b.reshape(1, Cout, 1),
                             (target_time, Cout, 1)).reshape(M, 1).astype(jnp.float32)

    # ---- tiling over the H*W plane (lane axis): cdiv grid + padded tail.
    if hw <= max_hw_tile:
        tile_hw, n_hw, hw_pad = hw, 1, hw                         # full plane in one tile
    else:
        tile_hw = max_hw_tile                                     # multiple of 128
        n_hw = pl.cdiv(hw, tile_hw)
        hw_pad = n_hw * tile_hw
    # keep both TensorCores busy on dual-TC chips (v7x) when B == 1
    if B == 1 and n_hw == 1 and hw > 128:
        tile_hw = ((hw + 255) // 256) * 128                       # multiple of 128, >= hw/2
        n_hw, hw_pad = 2, 2 * tile_hw
    if hw_pad != hw:
        cols = jnp.pad(cols, ((0, 0), (0, 0), (0, hw_pad - hw)))

    # explicit VMEM budget: double-buffered cols + out blocks, weights, headroom
    vmem_bytes = (2 * DK * tile_hw * 2          # bf16 cols block x2
                  + 2 * M * tile_hw * 4         # f32 out block x2
                  + M * DK * 2 + M * 4          # fused weight + bias
                  + (4 << 20))                  # headroom
    vmem_bytes = int(min(max(vmem_bytes, 16 << 20), 48 << 20))    # fits v7x's 64 MiB VMEM

    out = pl.pallas_call(
        _grid_decoder_kernel,
        out_shape=jax.ShapeDtypeStruct((B, M, hw_pad), jnp.float32),
        grid_spec=pltpu.PrefetchScalarGridSpec(
            num_scalar_prefetch=0,
            grid=(B, n_hw),
            in_specs=[
                pl.BlockSpec((1, DK, tile_hw), lambda b, j: (b, 0, j)),
                pl.BlockSpec((M, DK), lambda b, j: (0, 0)),
                pl.BlockSpec((M, 1), lambda b, j: (0, 0)),
            ],
            out_specs=pl.BlockSpec((1, M, tile_hw), lambda b, j: (b, 0, j)),
        ),
        # no cross-iteration carry -> both axes parallel (dual-TC sharding on v7x)
        compiler_params=pltpu.CompilerParams(
            dimension_semantics=("parallel", "parallel"),
            vmem_limit_bytes=vmem_bytes),
    )(cols, w_big, b_big)

    # tiny wrapper-side reshape/transpose back to channels-last; result equals the
    # torch `interpolate(conv(x)).permute(0, 2, 3, 4, 1)`.
    out = out[:, :, :hw].reshape(B, target_time, Cout, H, W)
    return jnp.transpose(out, (0, 1, 3, 4, 2))


def graph_decoder(graph_input, w1, b1, w2, b2, *, max_tile_rows=1024):
    """graph_input: (B, t, n, Din) -> (B, t, n, Dout) via Linear -> ReLU -> Linear."""
    B, T, N, Din = graph_input.shape
    Dh = w1.shape[1]
    Dout = w2.shape[1]
    rows = B * T * N

    # rows on the lane axis (tiny wrapper transpose) so every in-kernel load
    # and store is lane-dense instead of Dout=3-wide masked stores.
    xt = graph_input.reshape(rows, Din).T                         # (Din, rows)

    if rows <= max_tile_rows:
        tile, rows_pad = rows, rows                               # single grid step
    else:
        tile = max_tile_rows                                      # multiple of 128
        rows_pad = pl.cdiv(rows, tile) * tile                     # padded tail, no assert
        xt = jnp.pad(xt, ((0, 0), (0, rows_pad - rows)))
    n_tiles = rows_pad // tile

    out_t = pl.pallas_call(
        _mlp_kernel,
        out_shape=jax.ShapeDtypeStruct((Dout, rows_pad), jnp.float32),
        grid_spec=pltpu.PrefetchScalarGridSpec(
            num_scalar_prefetch=0,
            grid=(n_tiles,),
            in_specs=[
                pl.BlockSpec((Din, tile), lambda i: (0, i)),
                pl.BlockSpec((Dh, Din), lambda i: (0, 0)),
                pl.BlockSpec((Dh, 1), lambda i: (0, 0)),
                pl.BlockSpec((Dout, Dh), lambda i: (0, 0)),
                pl.BlockSpec((Dout, 1), lambda i: (0, 0)),
            ],
            out_specs=pl.BlockSpec((Dout, tile), lambda i: (0, i)),
        ),
        compiler_params=pltpu.CompilerParams(dimension_semantics=("parallel",)),
    )(xt, w1.T, b1.reshape(Dh, 1), w2.T, b2.reshape(Dout, 1))

    return out_t[:, :rows].T.reshape(B, T, N, Dout)


def time_series_predictor(grid_input, graph_input, params, target_time):
    grid_out = grid_decoder(grid_input, params["conv_w"], params["conv_b"], target_time)
    graph_out = graph_decoder(graph_input, params["w1"], params["b1"],
                              params["w2"], params["b2"])
    return grid_out, graph_out


# ----------------------------------------------------------------------------
# pure-JAX reference (for a sanity check of the Pallas kernels)
# ----------------------------------------------------------------------------
def reference(grid_input, graph_input, params, target_time):
    x = jnp.transpose(grid_input, (0, 2, 3, 4, 1))  # NDHWC
    conv = jax.lax.conv_general_dilated(
        x, params["conv_w"], window_strides=(1, 1, 1), padding="SAME",
        dimension_numbers=("NDHWC", "DHWIO", "NDHWC"),
    ) + params["conv_b"]
    D = conv.shape[1]
    coeffs = _depth_interp_coeffs(D, target_time)
    grid_out = jnp.stack(
        [(1.0 - lam) * conv[:, z0] + lam * conv[:, z1] for (z0, z1, lam) in coeffs],
        axis=1,
    )  # (B, T_out, H, W, Cout)

    h = jnp.maximum(graph_input @ params["w1"] + params["b1"], 0.0)
    graph_out = h @ params["w2"] + params["b2"]
    return grid_out, graph_out


# ----------------------------------------------------------------------------
# main
# ----------------------------------------------------------------------------
if __name__ == "__main__":
    # module config
    GRID_INPUT_DIM = 4      # conv in-channels (the "t" axis of grid_input)
    GRAPH_INPUT_DIM = 32
    TARGET_VARIABLE = 3
    TARGET_TIME = 8
    N_NODES = 16

    # example input shapes
    B = 2
    D_IN, H, W = 6, 16, 16  # grid depth / spatial
    T_GRAPH = 8             # graph time steps

    key = jax.random.PRNGKey(0)
    k_gi, k_gr, k_cw, k_cb, k_w1, k_b1, k_w2, k_b2 = jax.random.split(key, 8)

    grid_input = jax.random.normal(k_gi, (B, GRID_INPUT_DIM, D_IN, H, W), jnp.float32)
    graph_input = jax.random.normal(k_gr, (B, T_GRAPH, N_NODES, GRAPH_INPUT_DIM), jnp.float32)

    params = {
        # Conv3d(grid_input_dim -> target_variable, k=3, pad=1), weight stored DHWIO
        "conv_w": 0.05 * jax.random.normal(
            k_cw, (3, 3, 3, GRID_INPUT_DIM, TARGET_VARIABLE), jnp.float32),
        "conv_b": 0.05 * jax.random.normal(k_cb, (TARGET_VARIABLE,), jnp.float32),
        # MLP(graph_input_dim -> graph_input_dim -> target_variable), weights stored (in, out)
        "w1": 0.05 * jax.random.normal(k_w1, (GRAPH_INPUT_DIM, GRAPH_INPUT_DIM), jnp.float32),
        "b1": 0.05 * jax.random.normal(k_b1, (GRAPH_INPUT_DIM,), jnp.float32),
        "w2": 0.05 * jax.random.normal(k_w2, (GRAPH_INPUT_DIM, TARGET_VARIABLE), jnp.float32),
        "b2": 0.05 * jax.random.normal(k_b2, (TARGET_VARIABLE,), jnp.float32),
    }

    grid_out, graph_out = time_series_predictor(grid_input, graph_input, params, TARGET_TIME)
    jax.block_until_ready((grid_out, graph_out))

    # sanity check against a pure-f32 JAX reference
    ref_grid, ref_graph = reference(grid_input, graph_input, params, TARGET_TIME)
    assert grid_out.shape == (B, TARGET_TIME, H, W, TARGET_VARIABLE)
    assert graph_out.shape == (B, T_GRAPH, N_NODES, TARGET_VARIABLE)
    # grid path stores its im2col activations and the fused (interp x conv) weight in
    # bf16 (f32 accumulation), so allow bf16-level tolerance there; graph path is pure f32.
    np.testing.assert_allclose(np.asarray(grid_out), np.asarray(ref_grid), rtol=2e-2, atol=2e-2)
    np.testing.assert_allclose(np.asarray(graph_out), np.asarray(ref_graph), rtol=1e-4, atol=1e-4)

    print("KERNEL_OK")
</pallas_src>

<mosaic_0001>
module attributes {stable_mosaic.version = 11 : i64} {
  func.func @_grid_decoder_kernel(%arg0: i32, %arg1: i32, %arg2: memref<1x768x256xbf16, #tpu.memory_space<vmem>>, %arg3: memref<24x768xbf16, #tpu.memory_space<vmem>>, %arg4: memref<24x1xf32, #tpu.memory_space<vmem>>, %arg5: memref<1x24x256xf32, #tpu.memory_space<vmem>>) attributes {dimension_semantics = [#tpu.dimension_semantics<parallel>, #tpu.dimension_semantics<parallel>], iteration_bounds = array<i64: 2, 1>, scalar_prefetch = 0 : i64, scratch_operands = 0 : i64, tpu.core_type = #tpu.core_type<tc>, window_params = [{transform_indices = @transform_0, window_bounds = array<i64: 1, 768, 256>}, {pipeline_mode = #tpu.pipeline_mode<synchronous>, transform_indices = @transform_1, window_bounds = array<i64: 24, 768>}, {pipeline_mode = #tpu.pipeline_mode<synchronous>, transform_indices = @transform_2, window_bounds = array<i64: 24, 1>}, {transform_indices = @transform_3, window_bounds = array<i64: 1, 24, 256>}]} {
    %c0 = arith.constant 0 : index
    %c0_0 = arith.constant 0 : index
    %0 = vector.load %arg3[%c0, %c0_0] : memref<24x768xbf16, #tpu.memory_space<vmem>>, vector<24x768xbf16>
    %c0_1 = arith.constant 0 : index
    %c0_2 = arith.constant 0 : index
    %c0_3 = arith.constant 0 : index
    %1 = vector.load %arg2[%c0_1, %c0_2, %c0_3] : memref<1x768x256xbf16, #tpu.memory_space<vmem>>, vector<1x768x256xbf16>
    %2 = vector.shape_cast %1 : vector<1x768x256xbf16> to vector<768x256xbf16>
    %cst = arith.constant dense<0.000000e+00> : vector<24x256xf32>
    %3 = tpu.matmul %0, %2, %cst {dimension_numbers = #tpu.dot_dimension_numbers<[1], [0], [0], [1], [0, 0, 1, 1], [], []>} : vector<24x768xbf16>, vector<768x256xbf16>, vector<24x256xf32> -> vector<24x256xf32>
    %c0_4 = arith.constant 0 : index
    %c0_5 = arith.constant 0 : index
    %4 = vector.load %arg4[%c0_4, %c0_5] : memref<24x1xf32, #tpu.memory_space<vmem>>, vector<24x1xf32>
    %5 = vector.broadcast %4 : vector<24x1xf32> to vector<24x256xf32>
    %6 = arith.addf %3, %5 : vector<24x256xf32>
    %c0_6 = arith.constant 0 : index
    %c0_7 = arith.constant 0 : index
    %c0_8 = arith.constant 0 : index
    %7 = vector.load %arg5[%c0_6, %c0_7, %c0_8] : memref<1x24x256xf32, #tpu.memory_space<vmem>>, vector<1x24x256xf32>
    %8 = vector.shape_cast %7 : vector<1x24x256xf32> to vector<24x256xf32>
    %9 = vector.shape_cast %6 : vector<24x256xf32> to vector<1x24x256xf32>
    tpu.vector_store %arg5[%c0_6, %c0_7, %c0_8], %9 {strides = array<i32>} : memref<1x24x256xf32, #tpu.memory_space<vmem>>, vector<1x24x256xf32>,
    return
  }
  func.func @transform_0(%arg0: i32, %arg1: i32) -> (i32, i32, i32) {
    %c0_i32 = arith.constant 0 : i32
    %c0_i32_0 = arith.constant 0 : i32
    return %arg0, %c0_i32, %arg1 : i32, i32, i32
  }
  func.func @transform_1(%arg0: i32, %arg1: i32) -> (i32, i32) {
    %c0_i32 = arith.constant 0 : i32
    %c0_i32_0 = arith.constant 0 : i32
    %c0_i32_1 = arith.constant 0 : i32
    return %c0_i32, %c0_i32_0 : i32, i32
  }
  func.func @transform_2(%arg0: i32, %arg1: i32) -> (i32, i32) {
    %c0_i32 = arith.constant 0 : i32
    %c0_i32_0 = arith.constant 0 : i32
    %c0_i32_1 = arith.constant 0 : i32
    return %c0_i32, %c0_i32_0 : i32, i32
  }
  func.func @transform_3(%arg0: i32, %arg1: i32) -> (i32, i32, i32) {
    %c0_i32 = arith.constant 0 : i32
    %c0_i32_0 = arith.constant 0 : i32
    return %arg0, %c0_i32, %arg1 : i32, i32, i32
  }
}

</mosaic_0001>

<llo_original>
// kernel: tpu_custom_call.1
$region0: #{tpu_custom_call.1}
  #allocation0 [shape = 'u32[]', space=smem, size = 0x4, offset = 0x4, fixed_abs, tag = 'smem constant byte address 0x4 - core index']
  #allocation1 [shape = 'u32[144,128]{1,0:T(1,128)}', space=vmem, size = 0x12000, scoped, tag = 'internal scratch']
  %s0 = inlined_call_operand.hbm [shape: bf16[2,768,256], index: 0, kind: input, shape index: {}]
  %s1 = inlined_call_operand.hbm [shape: bf16[24,768], index: 1, kind: input, shape index: {}]
  %s2 = inlined_call_operand.vmem [shape: f32[24,1], index: 2, kind: input, shape index: {}]
  %s3 = inlined_call_operand.hbm [shape: f32[2,24,256], index: 3, kind: output, shape index: {}]
  %s4 = sld [smem:[#allocation0]]
  $region53: #{tpu_custom_call.1} parent=0
    _
  %s6 = ssub.s32 1, %s4
  %s7 = scalar_select 0, %s6, %s4
  $region1: #{tpu_custom_call.1} parent=0
    #allocation2 [shape = 'u8[786432]{0}', space=vmem, size = 0xc0000, scoped, tag = 'input window, operand 0']
    #allocation3 [shape = 's32[2]{0}', space=sflag, size = 0x8, scoped, tag = 'scoped memory for tpu_custom_call.1']
    #allocation4 [shape = 's32[2]{0}', space=sflag, size = 0x8, scoped, tag = 'scoped memory for tpu_custom_call.1']
    #allocation5 [shape = 'u8[36864]{0}', space=vmem, size = 0x9000, scoped, tag = 'input window, operand 1, single buffered']
    #allocation6 [shape = 's32[1]{0}', space=sflag, size = 0x4, scoped, tag = 'scoped memory for tpu_custom_call.1']
    #allocation7 [shape = 'u8[49152]{0}', space=vmem, size = 0xc000, scoped, tag = 'output window, operand 0']
    %8 = vsyncpa [#allocation3], 0
    %s9 = scalar_lea.sflag [#allocation3], 1
    %10 = vsyncpa %s9, 0
    %11 = vsyncpa [#allocation6], 0
    %12 = vsyncpa [#allocation4], 0
    %s13 = scalar_lea.sflag [#allocation4], 1
    %14 = vsyncpa %s13, 0
    loop: start=0, step=1, limit=4
    $region2: #{tpu_custom_call.1} parent=1 // loop_pre_header
      _
    $region3: #{tpu_custom_call.1} parent=1 // loop_header
      %s16 = sphi 0, %s20
      %p17 = scmp.ge.s32.totalorder %s16, 4
      %s23 = sphi 0, %s35
      %s24 = sphi 0, %s31
      %s25 = sphi 0, %s23
      %s26 = sphi 0, %s24
      %s27 = sphi 0, %s25
      %s28 = sphi 0, %s26
      %s40 = sphi 0, %s42
      %s43 = sphi 0, %s40
      %s44 = sphi 0, %s43
      %s60 = sphi 0, %s44
      %s64 = sphi 0, %s64
      %s66 = sphi 0, %s64
      %s67 = sphi 0, %s66
      %s81 = sphi 0, %s67
      %s85 = sphi 0, %s85
      %s87 = sphi 0, %s85
      %s88 = sphi 0, %s87
      %s102 = sphi 0, %s88
      %s110 = sphi 0, %s112
      %s113 = sphi 0, %s110
      %s114 = sphi 0, %s113
      %s130 = sphi 0, %s114
    $region4: #{tpu_custom_call.1} parent=1 // loop_header_branch
      %19 = sbr.rel (%p17) target = $region8
    $region5: #{tpu_custom_call.1} parent=1 // loop_body
      %s21 = ssub.s32 %s16, 1
      %s22 = ssub.s32 %s16, 2
      %s29 = sadd.s32 1, %s24
      %p30 = scmp.ge.s32.totalorder %s29, 1
      %s31 = scalar_select %p30, 0, %s29
      %s32 = sadd.s32 1, %s23
      %s33 = scalar_select %p30, %s32, %s23
      %p34 = scmp.ge.s32.totalorder %s33, 2
      %s35 = scalar_select %p34, 0, %s33
      %s36 = ssub.s32 %s23, %s35
      %s37 = ssub.s32 %s24, %s31
      %s38 = sor.u32 %s36, %s37
      %p39 = scmp.eq.s32.totalorder %s38, 0
      %s41 = sadd.s32 %s40, 1
      %s42 = scalar_select %p39, %s40, %s41
      %p45 = pneg %p39
      %p46 = scmp.eq.s32.totalorder %s16, 1
      %p47 = por %p45, %p46
      %p48 = scmp.ne.s32.totalorder %s40, %s43
      %p49 = scmp.eq.s32.totalorder %s16, 0
      %p50 = por %p48, %p49
      %p51 = scmp.ne.s32.totalorder %s40, %s43
      %p52 = scmp.eq.s32.totalorder %s21, 1
      %p53 = por %p51, %p52
      %p54 = scmp.ne.s32.totalorder %s43, %s44
      %p55 = scmp.eq.s32.totalorder %s21, 0
      %p56 = por %p54, %p55
      %p57 = scmp.ne.s32.totalorder %s43, %s44
      %p58 = scmp.eq.s32.totalorder %s22, 1
      %p59 = por %p57, %p58
      %p61 = scmp.ne.s32.totalorder %s44, %s60
      %p62 = scmp.eq.s32.totalorder %s22, 0
      %p63 = por %p61, %p62
      %s65 = sadd.s32 %s64, 1
      %p68 = scmp.eq.s32.totalorder %s16, 1
      %p69 = scmp.ne.s32.totalorder %s64, %s66
      %p70 = scmp.eq.s32.totalorder %s16, 0
      %p71 = por %p69, %p70
      %p72 = scmp.ne.s32.totalorder %s64, %s66
      %p73 = scmp.eq.s32.totalorder %s21, 1
      %p74 = por %p72, %p73
      %p75 = scmp.ne.s32.totalorder %s66, %s67
      %p76 = scmp.eq.s32.totalorder %s21, 0
      %p77 = por %p75, %p76
      %p78 = scmp.ne.s32.totalorder %s66, %s67
      %p79 = scmp.eq.s32.totalorder %s22, 1
      %p80 = por %p78, %p79
      %p82 = scmp.ne.s32.totalorder %s67, %s81
      %p83 = scmp.eq.s32.totalorder %s22, 0
      %p84 = por %p82, %p83
      %s86 = sadd.s32 %s85, 1
      %p89 = scmp.eq.s32.totalorder %s16, 1
      %p90 = scmp.ne.s32.totalorder %s85, %s87
      %p91 = scmp.eq.s32.totalorder %s16, 0
      %p92 = por %p90, %p91
      %p93 = scmp.ne.s32.totalorder %s85, %s87
      %p94 = scmp.eq.s32.totalorder %s21, 1
      %p95 = por %p93, %p94
      %p96 = scmp.ne.s32.totalorder %s87, %s88
      %p97 = scmp.eq.s32.totalorder %s21, 0
      %p98 = por %p96, %p97
      %p99 = scmp.ne.s32.totalorder %s87, %s88
      %p100 = scmp.eq.s32.totalorder %s22, 1
      %p101 = por %p99, %p100
      %p103 = scmp.ne.s32.totalorder %s88, %s102
      %p104 = scmp.eq.s32.totalorder %s22, 0
      %p105 = por %p103, %p104
      %s106 = ssub.s32 %s23, %s35
      %s107 = ssub.s32 %s24, %s31
      %s108 = sor.u32 %s106, %s107
      %p109 = scmp.eq.s32.totalorder %s108, 0
      %s111 = sadd.s32 %s110, 1
      %s112 = scalar_select %p109, %s110, %s111
      %p115 = pneg %p109
      %p116 = scmp.eq.s32.totalorder %s16, 1
      %p117 = por %p115, %p116
      %p118 = scmp.ne.s32.totalorder %s110, %s113
      %p119 = scmp.eq.s32.totalorder %s16, 0
      %p120 = por %p118, %p119
      %p121 = scmp.ne.s32.totalorder %s110, %s113
      %p122 = scmp.eq.s32.totalorder %s21, 1
      %p123 = por %p121, %p122
      %p124 = scmp.ne.s32.totalorder %s113, %s114
      %p125 = scmp.eq.s32.totalorder %s21, 0
      %p126 = por %p124, %p125
      %p127 = scmp.ne.s32.totalorder %s113, %s114
      %p128 = scmp.eq.s32.totalorder %s22, 1
      %p129 = por %p127, %p128
      %p131 = scmp.ne.s32.totalorder %s114, %s130
      %p132 = scmp.eq.s32.totalorder %s22, 0
      %p133 = por %p131, %p132
      %p134 = scmp.le.s32.totalorder 1, %s16
      %p135 = scmp.lt.s32.totalorder %s16, 3
      %p136 = pnand %p134, %p135
      %p137 = pneg %p136
      // Predicated region
      $region9: #{tpu_custom_call.1} parent=5 // pred_check
        _
      $region10: #{tpu_custom_call.1} parent=5 // pred_check_branch
        %139 = sbr.rel (%p136) target = $region12
      $region11: #{tpu_custom_call.1} parent=5 // pred_region
        %s140 = ssub.s32 %s16, 1
        // Predicated region
        $region13: #{tpu_custom_call.1} parent=11 // pred_check
          %p141 = pneg %p77
        $region14: #{tpu_custom_call.1} parent=11 // pred_check_branch
          %143 = sbr.rel (%p141) target = $region16
        $region15: #{tpu_custom_call.1} parent=11 // pred_region
          %s145 = ssub.s32 1152, 1152
          %146 = vsyncadd [#allocation6], %s145
          %s147 = sshll.u32 [#allocation5], 4
          %s148 = int_to_ptr.vmem [resolvable:$true] %s147
          %153 = dma.hbm_to_vmem [thread:$0]  %s1, 1152, %s148, [#allocation6], 384, 384, 24
        $region16: #{tpu_custom_call.1} parent=11 // pred_fallthru
          _
        // Predicated region
        $region17: #{tpu_custom_call.1} parent=11 // pred_check
          %p154 = pneg %p98
        $region18: #{tpu_custom_call.1} parent=11 // pred_check_branch
          %156 = sbr.rel (%p154) target = $region20
        $region19: #{tpu_custom_call.1} parent=11 // pred_region
          _
        $region20: #{tpu_custom_call.1} parent=11 // pred_fallthru
          _
      $region12: #{tpu_custom_call.1} parent=5 // pred_fallthru
        _
      %p157 = scmp.lt.s32.totalorder %s16, 2
      // Predicated region
      $region21: #{tpu_custom_call.1} parent=5 // pred_check
        %p158 = pneg %p157
      $region22: #{tpu_custom_call.1} parent=5 // pred_check_branch
        %160 = sbr.rel (%p158) target = $region24
      $region23: #{tpu_custom_call.1} parent=5 // pred_region
        // Predicated region
        $region25: #{tpu_custom_call.1} parent=23 // pred_check
          %p161 = pneg %p50
        $region26: #{tpu_custom_call.1} parent=23 // pred_check_branch
          %163 = sbr.rel (%p161) target = $region28
        $region27: #{tpu_custom_call.1} parent=23 // pred_region
          %s164 = sand.u32 %s40, 1
          %s165 = scalar_lea.sflag [#allocation3], %s164
          %s166 = sand.u32 %s40, 1
          %s167 = smul.addr %s166, 768
          %s168 = scalar_lea.vmem [#allocation2], %s167
          %s169 = smul.u32 2, %s24
          %s171 = ssub.s32 12288, 12288
          %172 = vsyncadd %s165, %s171
          %s173 = smul.addr %s23, 192
          %s174 = sadd.s32 %s169, %s173
          %s175 = smul.addr %s174, 64
          %s176 = scalar_lea.hbm %s0, %s175
          %s177 = sshll.u32 %s168, 4
          %s178 = int_to_ptr.vmem [resolvable:$true] %s177
          %183 = dma.hbm_to_vmem [thread:$0]  %s176, 12288, %s178, %s165, 128, 128, 8
        $region28: #{tpu_custom_call.1} parent=23 // pred_fallthru
          _
      $region24: #{tpu_custom_call.1} parent=5 // pred_fallthru
        _
      %p184 = scmp.le.s32.totalorder 1, %s16
      %p185 = scmp.lt.s32.totalorder %s16, 3
      %p186 = pnand %p184, %p185
      %p187 = pneg %p186
      // Predicated region
      $region29: #{tpu_custom_call.1} parent=5 // pred_check
        _
      $region30: #{tpu_custom_call.1} parent=5 // pred_check_branch
        %189 = sbr.rel (%p186) target = $region32
      $region31: #{tpu_custom_call.1} parent=5 // pred_region
        %s190 = ssub.s32 %s16, 1
        %s191 = sand.u32 %s43, 1
        %s192 = scalar_lea.sflag [#allocation3], %s191
        %s193 = sand.u32 %s43, 1
        %s194 = smul.addr %s193, 768
        %s195 = scalar_lea.vmem [#allocation2], %s194
        // Predicated region
        $region33: #{tpu_custom_call.1} parent=31 // pred_check
          %p196 = pneg %p56
        $region34: #{tpu_custom_call.1} parent=31 // pred_check_branch
          %198 = sbr.rel (%p196) target = $region36
        $region35: #{tpu_custom_call.1} parent=31 // pred_region
          %199 = dma.done %s192, 12288
        $region36: #{tpu_custom_call.1} parent=31 // pred_fallthru
          _
        // Predicated region
        $region37: #{tpu_custom_call.1} parent=31 // pred_check
          %p200 = pneg %p77
        $region38: #{tpu_custom_call.1} parent=31 // pred_check_branch
          %202 = sbr.rel (%p200) target = $region40
        $region39: #{tpu_custom_call.1} parent=31 // pred_region
          %203 = dma.done [#allocation6], 1152
        $region40: #{tpu_custom_call.1} parent=31 // pred_fallthru
          _
        %s204 = sand.u32 %s43, 1
        %s205 = scalar_lea.sflag [#allocation3], %s204
        %s206 = sand.u32 %s43, 1
        %s207 = smul.addr %s206, 768
        %s208 = scalar_lea.vmem [#allocation2], %s207
        %p209 = pneg %p56
        %p210 = pneg %p53
        %p211 = pneg %p77
        %p212 = pneg %p74
        %p213 = pneg %p98
        %p214 = pneg %p95
        %p215 = pneg %p126
        %p216 = pneg %p123
        %s217 = sand.u32 %s113, 1
        %s218 = scalar_lea.sflag [#allocation4], %s217
        %s219 = sand.u32 %s113, 1
        %s220 = smul.addr %s219, 48
        %s221 = scalar_lea.vmem [#allocation7], %s220
        %s222 = smul.u32 2, %s26
        %s223 = smul.u32 2, %s26
        %v224 = vld [vmem:[#allocation5] sm:$0xff]
        %v225 = vld [vmem:[#allocation5 + $0x8] sm:$0xff]
        %v226 = vld [vmem:[#allocation5 + $0x10] sm:$0xff]
        %v227 = vld [vmem:[#allocation5 + $0x18] sm:$0xff]
        %v228 = vld [vmem:[#allocation5 + $0x20] sm:$0xff]
        %v229 = vld [vmem:[#allocation5 + $0x28] sm:$0xff]
        %v230 = vld [vmem:[#allocation5 + $0x30] sm:$0xff]
        %v231 = vld [vmem:[#allocation5 + $0x38] sm:$0xff]
        %v232 = vld [vmem:[#allocation5 + $0x40] sm:$0xff]
        %v233 = vld [vmem:[%s195] sm:$0xff]
        %v234 = vld [vmem:[%s195 + $0x8] sm:$0xff]
        %v235 = vld [vmem:[%s195 + $0x10] sm:$0xff]
        %v236 = vld [vmem:[%s195 + $0x18] sm:$0xff]
        %v237 = vld [vmem:[%s195 + $0x20] sm:$0xff]
        %v238 = vld [vmem:[%s195 + $0x28] sm:$0xff]
        %v239 = vld [vmem:[%s195 + $0x30] sm:$0xff]
        %v240 = vld [vmem:[%s195 + $0x38] sm:$0xff]
        %v241 = vld [vmem:[%s195 + $0x40] sm:$0xff]
        %v242 = vld [vmem:[%s195 + $0x48] sm:$0xff]
        %v243 = vld [vmem:[%s195 + $0x50] sm:$0xff]
        %v244 = vld [vmem:[%s195 + $0x58] sm:$0xff]
        %v245 = vld [vmem:[%s195 + $0x60] sm:$0xff]
        %v246 = vld [vmem:[%s195 + $0x68] sm:$0xff]
        %v247 = vld [vmem:[%s195 + $0x70] sm:$0xff]
        %v248 = vld [vmem:[%s195 + $0x78] sm:$0xff]
        %v249 = vld [vmem:[%s195 + $0x80] sm:$0xff]
        %v250 = vld [vmem:[%s195 + $0x88] sm:$0xff]
        %v251 = vld [vmem:[%s195 + $0x90] sm:$0xff]
        %v252 = vld [vmem:[%s195 + $0x98] sm:$0xff]
        %v253 = vld [vmem:[%s195 + $0xa0] sm:$0xff]
        %v254 = vld [vmem:[%s195 + $0xa8] sm:$0xff]
        %v255 = vld [vmem:[%s195 + $0xb0] sm:$0xff]
        %v256 = vld [vmem:[%s195 + $0xb8] sm:$0xff]
        %v257 = vld [vmem:[%s195 + $0xc0] sm:$0xff]
        %v258 = vld [vmem:[%s195 + $0xc8] sm:$0xff]
        %v259 = vld [vmem:[%s195 + $0xd0] sm:$0xff]
        %v260 = vld [vmem:[%s195 + $0xd8] sm:$0xff]
        %v261 = vld [vmem:[%s195 + $0xe0] sm:$0xff]
        %v262 = vld [vmem:[%s195 + $0xe8] sm:$0xff]
        %v263 = vld [vmem:[%s195 + $0xf0] sm:$0xff]
        %v264 = vld [vmem:[%s195 + $0xf8] sm:$0xff]
        %v265 = vld [vmem:[%s195 + $0x100] sm:$0xff]
        %v266 = vld [vmem:[%s195 + $0x108] sm:$0xff]
        %v267 = vld [vmem:[%s195 + $0x110] sm:$0xff]
        %v268 = vld [vmem:[%s195 + $0x118] sm:$0xff]
        %v269 = vld [vmem:[%s195 + $0x120] sm:$0xff]
        %v270 = vld [vmem:[%s195 + $0x128] sm:$0xff]
        %v271 = vld [vmem:[%s195 + $0x130] sm:$0xff]
        %v272 = vld [vmem:[%s195 + $0x138] sm:$0xff]
        %v273 = vld [vmem:[%s195 + $0x140] sm:$0xff]
        %v274 = vld [vmem:[%s195 + $0x148] sm:$0xff]
        %v275 = vld [vmem:[%s195 + $0x150] sm:$0xff]
        %v276 = vld [vmem:[%s195 + $0x158] sm:$0xff]
        %v277 = vld [vmem:[%s195 + $0x160] sm:$0xff]
        %v278 = vld [vmem:[%s195 + $0x168] sm:$0xff]
        %v279 = vld [vmem:[%s195 + $0x170] sm:$0xff]
        %v280 = vld [vmem:[%s195 + $0x178] sm:$0xff]
        %v281 = vld [vmem:[%s195 + $0x180] sm:$0xff]
        %v282 = vld [vmem:[%s195 + $0x188] sm:$0xff]
        %v283 = vld [vmem:[%s195 + $0x190] sm:$0xff]
        %v284 = vld [vmem:[%s195 + $0x198] sm:$0xff]
        %v285 = vld [vmem:[%s195 + $0x1a0] sm:$0xff]
        %v286 = vld [vmem:[%s195 + $0x1a8] sm:$0xff]
        %v287 = vld [vmem:[%s195 + $0x1b0] sm:$0xff]
        %v288 = vld [vmem:[%s195 + $0x1b8] sm:$0xff]
        %v289 = vld [vmem:[%s195 + $0x1c0] sm:$0xff]
        %v290 = vld [vmem:[%s195 + $0x1c8] sm:$0xff]
        %v291 = vld [vmem:[%s195 + $0x1d0] sm:$0xff]
        %v292 = vld [vmem:[%s195 + $0x1d8] sm:$0xff]
        %v293 = vld [vmem:[%s195 + $0x1e0] sm:$0xff]
        %v294 = vld [vmem:[%s195 + $0x1e8] sm:$0xff]
        %v295 = vld [vmem:[%s195 + $0x1f0] sm:$0xff]
        %v296 = vld [vmem:[%s195 + $0x1f8] sm:$0xff]
        %v297 = vld [vmem:[%s195 + $0x200] sm:$0xff]
        %v298 = vld [vmem:[%s195 + $0x208] sm:$0xff]
        %v299 = vld [vmem:[%s195 + $0x210] sm:$0xff]
        %v300 = vld [vmem:[%s195 + $0x218] sm:$0xff]
        %v301 = vld [vmem:[%s195 + $0x220] sm:$0xff]
        %v302 = vld [vmem:[%s195 + $0x228] sm:$0xff]
        %v303 = vld [vmem:[%s195 + $0x230] sm:$0xff]
        %v304 = vld [vmem:[%s195 + $0x238] sm:$0xff]
        %v305 = vld [vmem:[%s195 + $0x240] sm:$0xff]
        %v306 = vld [vmem:[%s195 + $0x248] sm:$0xff]
        %v307 = vld [vmem:[%s195 + $0x250] sm:$0xff]
        %v308 = vld [vmem:[%s195 + $0x258] sm:$0xff]
        %v309 = vld [vmem:[%s195 + $0x260] sm:$0xff]
        %v310 = vld [vmem:[%s195 + $0x268] sm:$0xff]
        %v311 = vld [vmem:[%s195 + $0x270] sm:$0xff]
        %v312 = vld [vmem:[%s195 + $0x278] sm:$0xff]
        %v313 = vld [vmem:[%s195 + $0x280] sm:$0xff]
        %v314 = vld [vmem:[%s195 + $0x288] sm:$0xff]
        %v315 = vld [vmem:[%s195 + $0x290] sm:$0xff]
        %v316 = vld [vmem:[%s195 + $0x298] sm:$0xff]
        %v317 = vld [vmem:[%s195 + $0x2a0] sm:$0xff]
        %v318 = vld [vmem:[%s195 + $0x2a8] sm:$0xff]
        %v319 = vld [vmem:[%s195 + $0x2b0] sm:$0xff]
        %v320 = vld [vmem:[%s195 + $0x2b8] sm:$0xff]
        %v321 = vld [vmem:[%s195 + $0x2c0] sm:$0xff]
        %v322 = vld [vmem:[%s195 + $0x2c8] sm:$0xff]
        %v323 = vld [vmem:[%s195 + $0x2d0] sm:$0xff]
        %v324 = vld [vmem:[%s195 + $0x2d8] sm:$0xff]
        %v325 = vld [vmem:[%s195 + $0x2e0] sm:$0xff]
        %v326 = vld [vmem:[%s195 + $0x2e8] sm:$0xff]
        %v327 = vld [vmem:[%s195 + $0x2f0] sm:$0xff]
        %v328 = vld [vmem:[%s195 + $0x2f8] sm:$0xff]
        %v329 = vld [vmem:[%s2] sm:$0xff]
        %v330 = vld [vmem:[%s2 + $0x8] sm:$0xff]
        %v331 = vld [vmem:[%s2 + $0x10] sm:$0xff]
        %333 = vset.pattern.permute.xlu0 0
        %334 = vperm.xlu0 %333, %v329
        %v335 = vpop.permute.xlu0 %334
        %338 = vset.pattern.permute.xlu0 0
        %339 = vperm.xlu0 %338, %v330
        %v340 = vpop.permute.xlu0 %339
        %343 = vset.pattern.permute.xlu0 0
        %344 = vperm.xlu0 %343, %v331
        %v345 = vpop.permute.xlu0 %344
        %v356 = vunpack.c.l.b16 %v224
        %v357 = vunpack.c.h.b16 %v224
        %v358 = vunpack.c.l.b16 %v225
        %v359 = vunpack.c.h.b16 %v225
        %v360 = vunpack.c.l.b16 %v226
        %v361 = vunpack.c.h.b16 %v226
        %v362 = vunpack.c.l.b16 %v227
        %v363 = vunpack.c.h.b16 %v227
        %v364 = vunpack.c.l.b16 %v228
        %v365 = vunpack.c.h.b16 %v228
        %v366 = vunpack.c.l.b16 %v229
        %v367 = vunpack.c.h.b16 %v229
        %v368 = vunpack.c.l.b16 %v230
        %v369 = vunpack.c.h.b16 %v230
        %v370 = vunpack.c.l.b16 %v231
        %v371 = vunpack.c.h.b16 %v231
        %v372 = vunpack.c.l.b16 %v232
        %v373 = vunpack.c.h.b16 %v232
        %v374 = vpack.c.b16 %v362, %v356
        %v375 = vpack.c.b16 %v363, %v357
        %v376 = vpack.c.b16 %v364, %v358
        %v377 = vpack.c.b16 %v365, %v359
        %v378 = vpack.c.b16 %v366, %v360
        %v379 = vpack.c.b16 %v367, %v361
        %v380 = vpack.c.b16 %v368, %v368
        %v381 = vpack.c.b16 %v369, %v369
        %v382 = vpack.c.b16 %v370, %v370
        %v383 = vpack.c.b16 %v371, %v371
        %v384 = vpack.c.b16 %v372, %v372
        %v385 = vpack.c.b16 %v373, %v373
        %v494 = vunpack.c.l.b16 %v233
        %v495 = vunpack.c.h.b16 %v233
        %v496 = vunpack.c.l.b16 %v234
        %v497 = vunpack.c.h.b16 %v234
        %v498 = vunpack.c.l.b16 %v235
        %v499 = vunpack.c.h.b16 %v235
        %v500 = vunpack.c.l.b16 %v236
        %v501 = vunpack.c.h.b16 %v236
        %v502 = vunpack.c.l.b16 %v237
        %v503 = vunpack.c.h.b16 %v237
        %v504 = vunpack.c.l.b16 %v238
        %v505 = vunpack.c.h.b16 %v238
        %v506 = vunpack.c.l.b16 %v239
        %v507 = vunpack.c.h.b16 %v239
        %v508 = vunpack.c.l.b16 %v240
        %v509 = vunpack.c.h.b16 %v240
        %v510 = vunpack.c.l.b16 %v241
        %v511 = vunpack.c.h.b16 %v241
        %v512 = vunpack.c.l.b16 %v242
        %v513 = vunpack.c.h.b16 %v242
        %v514 = vunpack.c.l.b16 %v243
        %v515 = vunpack.c.h.b16 %v243
        %v516 = vunpack.c.l.b16 %v244
        %v517 = vunpack.c.h.b16 %v244
        %v518 = vunpack.c.l.b16 %v245
        %v519 = vunpack.c.h.b16 %v245
        %v520 = vunpack.c.l.b16 %v246
        %v521 = vunpack.c.h.b16 %v246
        %v522 = vunpack.c.l.b16 %v247
        %v523 = vunpack.c.h.b16 %v247
        %v524 = vunpack.c.l.b16 %v248
        %v525 = vunpack.c.h.b16 %v248
        %v526 = vunpack.c.l.b16 %v249
        %v527 = vunpack.c.h.b16 %v249
        %v528 = vunpack.c.l.b16 %v250
        %v529 = vunpack.c.h.b16 %v250
        %v530 = vunpack.c.l.b16 %v251
        %v531 = vunpack.c.h.b16 %v251
        %v532 = vunpack.c.l.b16 %v252
        %v533 = vunpack.c.h.b16 %v252
        %v534 = vunpack.c.l.b16 %v253
        %v535 = vunpack.c.h.b16 %v253
        %v536 = vunpack.c.l.b16 %v254
        %v537 = vunpack.c.h.b16 %v254
        %v538 = vunpack.c.l.b16 %v255
        %v539 = vunpack.c.h.b16 %v255
        %v540 = vunpack.c.l.b16 %v256
        %v541 = vunpack.c.h.b16 %v256
        %v542 = vunpack.c.l.b16 %v257
        %v543 = vunpack.c.h.b16 %v257
        %v544 = vunpack.c.l.b16 %v258
        %v545 = vunpack.c.h.b16 %v258
        %v546 = vunpack.c.l.b16 %v259
        %v547 = vunpack.c.h.b16 %v259
        %v548 = vunpack.c.l.b16 %v260
        %v549 = vunpack.c.h.b16 %v260
        %v550 = vunpack.c.l.b16 %v261
        %v551 = vunpack.c.h.b16 %v261
        %v552 = vunpack.c.l.b16 %v262
        %v553 = vunpack.c.h.b16 %v262
        %v554 = vunpack.c.l.b16 %v263
        %v555 = vunpack.c.h.b16 %v263
        %v556 = vunpack.c.l.b16 %v264
        %v557 = vunpack.c.h.b16 %v264
        %v558 = vunpack.c.l.b16 %v265
        %v559 = vunpack.c.h.b16 %v265
        %v560 = vunpack.c.l.b16 %v266
        %v561 = vunpack.c.h.b16 %v266
        %v562 = vunpack.c.l.b16 %v267
        %v563 = vunpack.c.h.b16 %v267
        %v564 = vunpack.c.l.b16 %v268
        %v565 = vunpack.c.h.b16 %v268
        %v566 = vunpack.c.l.b16 %v269
        %v567 = vunpack.c.h.b16 %v269
        %v568 = vunpack.c.l.b16 %v270
        %v569 = vunpack.c.h.b16 %v270
        %v570 = vunpack.c.l.b16 %v271
        %v571 = vunpack.c.h.b16 %v271
        %v572 = vunpack.c.l.b16 %v272
        %v573 = vunpack.c.h.b16 %v272
        %v574 = vunpack.c.l.b16 %v273
        %v575 = vunpack.c.h.b16 %v273
        %v576 = vunpack.c.l.b16 %v274
        %v577 = vunpack.c.h.b16 %v274
        %v578 = vunpack.c.l.b16 %v275
        %v579 = vunpack.c.h.b16 %v275
        %v580 = vunpack.c.l.b16 %v276
        %v581 = vunpack.c.h.b16 %v276
        %v582 = vunpack.c.l.b16 %v277
        %v583 = vunpack.c.h.b16 %v277
        %v584 = vunpack.c.l.b16 %v278
        %v585 = vunpack.c.h.b16 %v278
        %v586 = vunpack.c.l.b16 %v279
        %v587 = vunpack.c.h.b16 %v279
        %v588 = vunpack.c.l.b16 %v280
        %v589 = vunpack.c.h.b16 %v280
        %v590 = vunpack.c.l.b16 %v281
        %v591 = vunpack.c.h.b16 %v281
        %v592 = vunpack.c.l.b16 %v282
        %v593 = vunpack.c.h.b16 %v282
        %v594 = vunpack.c.l.b16 %v283
        %v595 = vunpack.c.h.b16 %v283
        %v596 = vunpack.c.l.b16 %v284
        %v597 = vunpack.c.h.b16 %v284
        %v598 = vunpack.c.l.b16 %v285
        %v599 = vunpack.c.h.b16 %v285
        %v600 = vunpack.c.l.b16 %v286
        %v601 = vunpack.c.h.b16 %v286
        %v602 = vunpack.c.l.b16 %v287
        %v603 = vunpack.c.h.b16 %v287
        %v604 = vunpack.c.l.b16 %v288
        %v605 = vunpack.c.h.b16 %v288
        %v606 = vunpack.c.l.b16 %v289
        %v607 = vunpack.c.h.b16 %v289
        %v608 = vunpack.c.l.b16 %v290
        %v609 = vunpack.c.h.b16 %v290
        %v610 = vunpack.c.l.b16 %v291
        %v611 = vunpack.c.h.b16 %v291
        %v612 = vunpack.c.l.b16 %v292
        %v613 = vunpack.c.h.b16 %v292
        %v614 = vunpack.c.l.b16 %v293
        %v615 = vunpack.c.h.b16 %v293
        %v616 = vunpack.c.l.b16 %v294
        %v617 = vunpack.c.h.b16 %v294
        %v618 = vunpack.c.l.b16 %v295
        %v619 = vunpack.c.h.b16 %v295
        %v620 = vunpack.c.l.b16 %v296
        %v621 = vunpack.c.h.b16 %v296
        %v622 = vunpack.c.l.b16 %v297
        %v623 = vunpack.c.h.b16 %v297
        %v624 = vunpack.c.l.b16 %v298
        %v625 = vunpack.c.h.b16 %v298
        %v626 = vunpack.c.l.b16 %v299
        %v627 = vunpack.c.h.b16 %v299
        %v628 = vunpack.c.l.b16 %v300
        %v629 = vunpack.c.h.b16 %v300
        %v630 = vunpack.c.l.b16 %v301
        %v631 = vunpack.c.h.b16 %v301
        %v632 = vunpack.c.l.b16 %v302
        %v633 = vunpack.c.h.b16 %v302
        %v634 = vunpack.c.l.b16 %v303
        %v635 = vunpack.c.h.b16 %v303
        %v636 = vunpack.c.l.b16 %v304
        %v637 = vunpack.c.h.b16 %v304
        %v638 = vunpack.c.l.b16 %v305
        %v639 = vunpack.c.h.b16 %v305
        %v640 = vunpack.c.l.b16 %v306
        %v641 = vunpack.c.h.b16 %v306
        %v642 = vunpack.c.l.b16 %v307
        %v643 = vunpack.c.h.b16 %v307
        %v644 = vunpack.c.l.b16 %v308
        %v645 = vunpack.c.h.b16 %v308
        %v646 = vunpack.c.l.b16 %v309
        %v647 = vunpack.c.h.b16 %v309
        %v648 = vunpack.c.l.b16 %v310
        %v649 = vunpack.c.h.b16 %v310
        %v650 = vunpack.c.l.b16 %v311
        %v651 = vunpack.c.h.b16 %v311
        %v652 = vunpack.c.l.b16 %v312
        %v653 = vunpack.c.h.b16 %v312
        %v654 = vunpack.c.l.b16 %v313
        %v655 = vunpack.c.h.b16 %v313
        %v656 = vunpack.c.l.b16 %v314
        %v657 = vunpack.c.h.b16 %v314
        %v658 = vunpack.c.l.b16 %v315
        %v659 = vunpack.c.h.b16 %v315
        %v660 = vunpack.c.l.b16 %v316
        %v661 = vunpack.c.h.b16 %v316
        %v662 = vunpack.c.l.b16 %v317
        %v663 = vunpack.c.h.b16 %v317
        %v664 = vunpack.c.l.b16 %v318
        %v665 = vunpack.c.h.b16 %v318
        %v666 = vunpack.c.l.b16 %v319
        %v667 = vunpack.c.h.b16 %v319
        %v668 = vunpack.c.l.b16 %v320
        %v669 = vunpack.c.h.b16 %v320
        %v670 = vunpack.c.l.b16 %v321
        %v671 = vunpack.c.h.b16 %v321
        %v672 = vunpack.c.l.b16 %v322
        %v673 = vunpack.c.h.b16 %v322
        %v674 = vunpack.c.l.b16 %v323
        %v675 = vunpack.c.h.b16 %v323
        %v676 = vunpack.c.l.b16 %v324
        %v677 = vunpack.c.h.b16 %v324
        %v678 = vunpack.c.l.b16 %v325
        %v679 = vunpack.c.h.b16 %v325
        %v680 = vunpack.c.l.b16 %v326
        %v681 = vunpack.c.h.b16 %v326
        %v682 = vunpack.c.l.b16 %v327
        %v683 = vunpack.c.h.b16 %v327
        %v684 = vunpack.c.l.b16 %v328
        %v685 = vunpack.c.h.b16 %v328
        %v686 = vpack.c.b16 %v496, %v494
        %v687 = vpack.c.b16 %v497, %v495
        %v688 = vpack.c.b16 %v500, %v498
        %v689 = vpack.c.b16 %v501, %v499
        %v690 = vpack.c.b16 %v504, %v502
        %v691 = vpack.c.b16 %v505, %v503
        %v692 = vpack.c.b16 %v508, %v506
        %v693 = vpack.c.b16 %v509, %v507
        %v694 = vpack.c.b16 %v512, %v510
        %v695 = vpack.c.b16 %v513, %v511
        %v696 = vpack.c.b16 %v516, %v514
        %v697 = vpack.c.b16 %v517, %v515
        %v698 = vpack.c.b16 %v520, %v518
        %v699 = vpack.c.b16 %v521, %v519
        %v700 = vpack.c.b16 %v524, %v522
        %v701 = vpack.c.b16 %v525, %v523
        %v702 = vpack.c.b16 %v528, %v526
        %v703 = vpack.c.b16 %v529, %v527
        %v704 = vpack.c.b16 %v532, %v530
        %v705 = vpack.c.b16 %v533, %v531
        %v706 = vpack.c.b16 %v536, %v534
        %v707 = vpack.c.b16 %v537, %v535
        %v708 = vpack.c.b16 %v540, %v538
        %v709 = vpack.c.b16 %v541, %v539
        %v710 = vpack.c.b16 %v544, %v542
        %v711 = vpack.c.b16 %v545, %v543
        %v712 = vpack.c.b16 %v548, %v546
        %v713 = vpack.c.b16 %v549, %v547
        %v714 = vpack.c.b16 %v552, %v550
        %v715 = vpack.c.b16 %v553, %v551
        %v716 = vpack.c.b16 %v556, %v554
        %v717 = vpack.c.b16 %v557, %v555
        %v718 = vpack.c.b16 %v560, %v558
        %v719 = vpack.c.b16 %v561, %v559
        %v720 = vpack.c.b16 %v564, %v562
        %v721 = vpack.c.b16 %v565, %v563
        %v722 = vpack.c.b16 %v568, %v566
        %v723 = vpack.c.b16 %v569, %v567
        %v724 = vpack.c.b16 %v572, %v570
        %v725 = vpack.c.b16 %v573, %v571
        %v726 = vpack.c.b16 %v576, %v574
        %v727 = vpack.c.b16 %v577, %v575
        %v728 = vpack.c.b16 %v580, %v578
        %v729 = vpack.c.b16 %v581, %v579
        %v730 = vpack.c.b16 %v584, %v582
        %v731 = vpack.c.b16 %v585, %v583
        %v732 = vpack.c.b16 %v588, %v586
        %v733 = vpack.c.b16 %v589, %v587
        %v734 = vpack.c.b16 %v592, %v590
        %v735 = vpack.c.b16 %v593, %v591
        %v736 = vpack.c.b16 %v596, %v594
        %v737 = vpack.c.b16 %v597, %v595
        %v738 = vpack.c.b16 %v600, %v598
        %v739 = vpack.c.b16 %v601, %v599
        %v740 = vpack.c.b16 %v604, %v602
        %v741 = vpack.c.b16 %v605, %v603
        %v742 = vpack.c.b16 %v608, %v606
        %v743 = vpack.c.b16 %v609, %v607
        %v744 = vpack.c.b16 %v612, %v610
        %v745 = vpack.c.b16 %v613, %v611
        %v746 = vpack.c.b16 %v616, %v614
        %v747 = vpack.c.b16 %v617, %v615
        %v748 = vpack.c.b16 %v620, %v618
        %v749 = vpack.c.b16 %v621, %v619
        %v750 = vpack.c.b16 %v624, %v622
        %v751 = vpack.c.b16 %v625, %v623
        %v752 = vpack.c.b16 %v628, %v626
        %v753 = vpack.c.b16 %v629, %v627
        %v754 = vpack.c.b16 %v632, %v630
        %v755 = vpack.c.b16 %v633, %v631
        %v756 = vpack.c.b16 %v636, %v634
        %v757 = vpack.c.b16 %v637, %v635
        %v758 = vpack.c.b16 %v640, %v638
        %v759 = vpack.c.b16 %v641, %v639
        %v760 = vpack.c.b16 %v644, %v642
        %v761 = vpack.c.b16 %v645, %v643
        %v762 = vpack.c.b16 %v648, %v646
        %v763 = vpack.c.b16 %v649, %v647
        %v764 = vpack.c.b16 %v652, %v650
        %v765 = vpack.c.b16 %v653, %v651
        %v766 = vpack.c.b16 %v656, %v654
        %v767 = vpack.c.b16 %v657, %v655
        %v768 = vpack.c.b16 %v660, %v658
        %v769 = vpack.c.b16 %v661, %v659
        %v770 = vpack.c.b16 %v664, %v662
        %v771 = vpack.c.b16 %v665, %v663
        %v772 = vpack.c.b16 %v668, %v666
        %v773 = vpack.c.b16 %v669, %v667
        %v774 = vpack.c.b16 %v672, %v670
        %v775 = vpack.c.b16 %v673, %v671
        %v776 = vpack.c.b16 %v676, %v674
        %v777 = vpack.c.b16 %v677, %v675
        %v778 = vpack.c.b16 %v680, %v678
        %v779 = vpack.c.b16 %v681, %v679
        %v780 = vpack.c.b16 %v684, %v682
        %v781 = vpack.c.b16 %v685, %v683
        %878 = vmatprep.subr.bf16.mxu0 %v687
        %879 = vmatpush1.bf16.msra.mxu0 %v686
        %880 = vmatprep.subr.bf16.mxu0 %v689
        %881 = vmatpush1.bf16.msra.mxu0 %v688
        %882 = vmatprep.subr.bf16.mxu0 %v691
        %883 = vmatpush1.bf16.msra.mxu0 %v690
        %884 = vmatprep.subr.bf16.mxu0 %v693
        %885 = vmatpush1.bf16.msra.mxu0 %v692
        %886 = vmatprep.subr.bf16.mxu0 %v695
        %887 = vmatpush1.bf16.msra.mxu0 %v694
        %888 = vmatprep.subr.bf16.mxu0 %v697
        %889 = vmatpush1.bf16.msra.mxu0 %v696
        %890 = vmatprep.subr.bf16.mxu0 %v699
        %891 = vmatpush1.bf16.msra.mxu0 %v698
        %892 = vmatprep.subr.bf16.mxu0 %v701
        %893 = vmatpush1.bf16.msra.mxu0 %v700
        %894 = vmatprep.subr.bf16.mxu0 %v703
        %895 = vmatpush1.bf16.msra.mxu0 %v702
        %896 = vmatprep.subr.bf16.mxu0 %v705
        %897 = vmatpush1.bf16.msra.mxu0 %v704
        %898 = vmatprep.subr.bf16.mxu0 %v707
        %899 = vmatpush1.bf16.msra.mxu0 %v706
        %900 = vmatprep.subr.bf16.mxu0 %v709
        %901 = vmatpush1.bf16.msra.mxu0 %v708
        %902 = vmatprep.subr.bf16.mxu0 %v711
        %903 = vmatpush1.bf16.msra.mxu0 %v710
        %904 = vmatprep.subr.bf16.mxu0 %v713
        %905 = vmatpush1.bf16.msra.mxu0 %v712
        %906 = vmatprep.subr.bf16.mxu0 %v715
        %907 = vmatpush1.bf16.msra.mxu0 %v714
        %908 = vmatprep.subr.bf16.mxu0 %v717
        %909 = vmatpush1.bf16.msra.mxu0 %v716
        %910 = vmatprep.mubr.bf16.mxu0 %v375
        %911 = vmatmul.mubr.bf16.gmra.mrb[0].mxu0 %v374
        %v912 = vpop.f32.mrb[0].mxu0
        %v913 = vadd.f32 %v335, %v912
        %v914 = vpop.f32.mrb[0].mxu0
        %v915 = vadd.f32 %v335, %v914
        %v916 = vpop.f32.mrb[0].mxu0
        %v917 = vadd.f32 %v340, %v916
        %v918 = vpop.f32.mrb[0].mxu0
        %v919 = vadd.f32 %v340, %v918
        %920 = vmatprep.mubr.bf16.mxu0 %v381
        %921 = vmatmul.mubr.bf16.gmra.mrb[0].mxu0 %v380
        %v922 = vpop.f32.mrb[0].mxu0
        %v923 = vadd.f32 %v345, %v922
        %v924 = vpop.f32.mrb[0].mxu0
        %v925 = vadd.f32 %v345, %v924
        %v926 = vpop.f32.mrb[0].mxu0
        %v927 = vpop.f32.mrb[0].mxu0
        %928 = vdwg.mxu0
        %929 = vmatprep.subr.bf16.mxu0 %v719
        %930 = vmatpush1.bf16.msra.mxu0 %v718
        %931 = vmatprep.subr.bf16.mxu0 %v721
        %932 = vmatpush1.bf16.msra.mxu0 %v720
        %933 = vmatprep.subr.bf16.mxu0 %v723
        %934 = vmatpush1.bf16.msra.mxu0 %v722
        %935 = vmatprep.subr.bf16.mxu0 %v725
        %936 = vmatpush1.bf16.msra.mxu0 %v724
        %937 = vmatprep.subr.bf16.mxu0 %v727
        %938 = vmatpush1.bf16.msra.mxu0 %v726
        %939 = vmatprep.subr.bf16.mxu0 %v729
        %940 = vmatpush1.bf16.msra.mxu0 %v728
        %941 = vmatprep.subr.bf16.mxu0 %v731
        %942 = vmatpush1.bf16.msra.mxu0 %v730
        %943 = vmatprep.subr.bf16.mxu0 %v733
        %944 = vmatpush1.bf16.msra.mxu0 %v732
        %945 = vmatprep.subr.bf16.mxu0 %v735
        %946 = vmatpush1.bf16.msra.mxu0 %v734
        %947 = vmatprep.subr.bf16.mxu0 %v737
        %948 = vmatpush1.bf16.msra.mxu0 %v736
        %949 = vmatprep.subr.bf16.mxu0 %v739
        %950 = vmatpush1.bf16.msra.mxu0 %v738
        %951 = vmatprep.subr.bf16.mxu0 %v741
        %952 = vmatpush1.bf16.msra.mxu0 %v740
        %953 = vmatprep.subr.bf16.mxu0 %v743
        %954 = vmatpush1.bf16.msra.mxu0 %v742
        %955 = vmatprep.subr.bf16.mxu0 %v745
        %956 = vmatpush1.bf16.msra.mxu0 %v744
        %957 = vmatprep.subr.bf16.mxu0 %v747
        %958 = vmatpush1.bf16.msra.mxu0 %v746
        %959 = vmatprep.subr.bf16.mxu0 %v749
        %960 = vmatpush1.bf16.msra.mxu0 %v748
        %961 = vmatprep.mubr.bf16.mxu0 %v377
        %962 = vmatmul.mubr.bf16.gmra.mrb[0].mxu0 %v376
        %v963 = vpop.f32.mrb[0].mxu0
        %v964 = vadd.f32 %v913, %v963
        %v965 = vpop.f32.mrb[0].mxu0
        %v966 = vadd.f32 %v915, %v965
        %v967 = vpop.f32.mrb[0].mxu0
        %v968 = vadd.f32 %v917, %v967
        %v969 = vpop.f32.mrb[0].mxu0
        %v970 = vadd.f32 %v919, %v969
        %971 = vmatprep.mubr.bf16.mxu0 %v383
        %972 = vmatmul.mubr.bf16.gmra.mrb[0].mxu0 %v382
        %v973 = vpop.f32.mrb[0].mxu0
        %v974 = vadd.f32 %v923, %v973
        %v975 = vpop.f32.mrb[0].mxu0
        %v976 = vadd.f32 %v925, %v975
        %v977 = vpop.f32.mrb[0].mxu0
        %v978 = vpop.f32.mrb[0].mxu0
        %979 = vdwg.mxu0
        %980 = vmatprep.subr.bf16.mxu0 %v751
        %981 = vmatpush1.bf16.msra.mxu0 %v750
        %982 = vmatprep.subr.bf16.mxu0 %v753
        %983 = vmatpush1.bf16.msra.mxu0 %v752
        %984 = vmatprep.subr.bf16.mxu0 %v755
        %985 = vmatpush1.bf16.msra.mxu0 %v754
        %986 = vmatprep.subr.bf16.mxu0 %v757
        %987 = vmatpush1.bf16.msra.mxu0 %v756
        %988 = vmatprep.subr.bf16.mxu0 %v759
        %989 = vmatpush1.bf16.msra.mxu0 %v758
        %990 = vmatprep.subr.bf16.mxu0 %v761
        %991 = vmatpush1.bf16.msra.mxu0 %v760
        %992 = vmatprep.subr.bf16.mxu0 %v763
        %993 = vmatpush1.bf16.msra.mxu0 %v762
        %994 = vmatprep.subr.bf16.mxu0 %v765
        %995 = vmatpush1.bf16.msra.mxu0 %v764
        %996 = vmatprep.subr.bf16.mxu0 %v767
        %997 = vmatpush1.bf16.msra.mxu0 %v766
        %998 = vmatprep.subr.bf16.mxu0 %v769
        %999 = vmatpush1.bf16.msra.mxu0 %v768
        %1000 = vmatprep.subr.bf16.mxu0 %v771
        %1001 = vmatpush1.bf16.msra.mxu0 %v770
        %1002 = vmatprep.subr.bf16.mxu0 %v773
        %1003 = vmatpush1.bf16.msra.mxu0 %v772
        %1004 = vmatprep.subr.bf16.mxu0 %v775
        %1005 = vmatpush1.bf16.msra.mxu0 %v774
        %1006 = vmatprep.subr.bf16.mxu0 %v777
        %1007 = vmatpush1.bf16.msra.mxu0 %v776
        %1008 = vmatprep.subr.bf16.mxu0 %v779
        %1009 = vmatpush1.bf16.msra.mxu0 %v778
        %1010 = vmatprep.subr.bf16.mxu0 %v781
        %1011 = vmatpush1.bf16.msra.mxu0 %v780
        %1012 = vmatprep.mubr.bf16.mxu0 %v379
        %1013 = vmatmul.mubr.bf16.gmra.mrb[0].mxu0 %v378
        %v1014 = vpop.f32.mrb[0].mxu0
        %v1015 = vadd.f32 %v964, %v1014
        %v1016 = vpop.f32.mrb[0].mxu0
        %v1017 = vadd.f32 %v966, %v1016
        %v1018 = vpop.f32.mrb[0].mxu0
        %v1019 = vadd.f32 %v968, %v1018
        %v1020 = vpop.f32.mrb[0].mxu0
        %v1021 = vadd.f32 %v970, %v1020
        %1022 = vmatprep.mubr.bf16.mxu0 %v385
        %1023 = vmatmul.mubr.bf16.gmra.mrb[0].mxu0 %v384
        %v1024 = vpop.f32.mrb[0].mxu0
        %v1025 = vadd.f32 %v974, %v1024
        %v1026 = vpop.f32.mrb[0].mxu0
        %v1027 = vadd.f32 %v976, %v1026
        %v1028 = vpop.f32.mrb[0].mxu0
        %v1029 = vpop.f32.mrb[0].mxu0
        %1030 = vdwg.mxu0
        %1031 = vst [vmem:[%s221] sm:$0xff] %v1015
        %1032 = vst [vmem:[%s221 + $0x8] sm:$0xff] %v1017
        %1033 = vst [vmem:[%s221 + $0x10] sm:$0xff] %v1019
        %1034 = vst [vmem:[%s221 + $0x18] sm:$0xff] %v1021
        %1035 = vst [vmem:[%s221 + $0x20] sm:$0xff] %v1025
        %1036 = vst [vmem:[%s221 + $0x28] sm:$0xff] %v1027
        %s1037 = sand.u32 %s113, 1
        %s1038 = scalar_lea.sflag [#allocation4], %s1037
        %s1039 = sand.u32 %s113, 1
        %s1040 = smul.addr %s1039, 48
        %s1041 = scalar_lea.vmem [#allocation7], %s1040
        // Predicated region
        $region41: #{tpu_custom_call.1} parent=31 // pred_check
          %p1042 = pneg %p123
        $region42: #{tpu_custom_call.1} parent=31 // pred_check_branch
          %1044 = sbr.rel (%p1042) target = $region44
        $region43: #{tpu_custom_call.1} parent=31 // pred_region
          %s1045 = smul.u32 2, %s26
          %s1047 = ssub.s32 768, 768
          %1048 = vsyncadd %s1038, %s1047
          %s1049 = smul.addr %s25, 6
          %s1050 = sadd.s32 %s1045, %s1049
          %s1051 = smul.addr %s1050, 128
          %s1052 = scalar_lea.hbm %s3, %s1051
          %s1053 = sshll.u32 %s1041, 4
          %s1054 = int_to_ptr.vmem [resolvable:$true] %s1053
          %1059 = dma.vmem_to_hbm [thread:$0]  %s1054, 768, %s1052, %s1038, 256, 256, 16
        $region44: #{tpu_custom_call.1} parent=31 // pred_fallthru
          _
      $region32: #{tpu_custom_call.1} parent=5 // pred_fallthru
        _
      %p1060 = scmp.le.s32.totalorder 2, %s16
      // Predicated region
      $region45: #{tpu_custom_call.1} parent=5 // pred_check
        %p1061 = pneg %p1060
      $region46: #{tpu_custom_call.1} parent=5 // pred_check_branch
        %1063 = sbr.rel (%p1061) target = $region48
      $region47: #{tpu_custom_call.1} parent=5 // pred_region
        %s1064 = ssub.s32 %s16, 2
        // Predicated region
        $region49: #{tpu_custom_call.1} parent=47 // pred_check
          %p1065 = pneg %p129
        $region50: #{tpu_custom_call.1} parent=47 // pred_check_branch
          %1067 = sbr.rel (%p1065) target = $region52
        $region51: #{tpu_custom_call.1} parent=47 // pred_region
          %s1068 = sand.u32 %s114, 1
          %s1069 = scalar_lea.sflag [#allocation4], %s1068
          %s1070 = sand.u32 %s114, 1
          %s1071 = smul.addr %s1070, 48
          %s1072 = scalar_lea.vmem [#allocation7], %s1071
          %1073 = dma.done %s1069, 768
        $region52: #{tpu_custom_call.1} parent=47 // pred_fallthru
          _
      $region48: #{tpu_custom_call.1} parent=5 // pred_fallthru
        _
    $region6: #{tpu_custom_call.1} parent=1 // loop_footer
      %s20 = sadd.s32 1, %s16
    $region7: #{tpu_custom_call.1} parent=1 // loop_footer_branch
      %15 = sbr.rel target = $region3
    $region8: #{tpu_custom_call.1} parent=1 // loop_exit
      _
    %1074 = vsyncpa [#allocation3], 1
    %s1075 = scalar_lea.sflag [#allocation3], 1
    %1076 = vsyncpa %s1075, 1
    %1077 = vsyncpa [#allocation6], 1
    %1078 = vsyncpa [#allocation4], 1
    %s1079 = scalar_lea.sflag [#allocation4], 1
    %1080 = vsyncpa %s1079, 1

</llo_original>
